<compile_context>
chip_gen: v5e
topology: v5e:2x2
jax: 0.10.0
libtpu: 0.0.40
codegen_flags: <defaults>
</compile_context>

<pallas_src>
import functools

import jax
import jax.numpy as jnp
from jax import lax
from jax.experimental import pallas as pl
from jax.experimental.pallas import tpu as pltpu


def _roll_lanes(v, shift):
    """Rotate along the last (lane) axis.

    Uses the XLU rotate (pltpu.roll) when the lane extent is 128-aligned so
    the shift stays off the saturated load/store slots; falls back to
    jnp.roll (concat of slices) for unaligned extents.
    """
    if v.shape[-1] % 128 == 0:
        return pltpu.roll(v, shift=shift, axis=1)
    return jnp.roll(v, shift, axis=-1)


def _conv3x3_relu_band_kernel(col_ref, xb_ref, xt_ref, xd_ref, w_ref, b_ref,
                              o_ref, sc_ref, *, TR, W2, Cin, Cout):
    """3x3 replicate-pad conv + bias + ReLU on one spatial row-band.

    col_ref : (1, EXT) int32    column index of every extended-band position
    xb_ref  : (1, Cin, TR*W2)   the band (TR shuffled rows, flattened)
    xt_ref  : (1, Cin, 8*W2)    8-row group holding the row just above the band
    xd_ref  : (1, Cin, 8*W2)    8-row group holding the row just below the band
    w_ref   : (3, Cout, 3*Cin)  weights grouped by kh; K order = kw-major, ci-minor
    b_ref   : (Cout, 1)         bias
    o_ref   : (1, Cout, TR*W2)  output band (flattened, lane-dense)
    sc_ref  : (3*Cin, EXT)      scratch: column-shifted copies of the extended band
    """
    b = pl.program_id(1)
    nb = pl.num_programs(1)
    BL = TR * W2
    EXT = BL + 2 * W2

    band = xb_ref[0]                                     # (Cin, BL)
    top_grp = xt_ref[0]                                  # (Cin, 8*W2)
    bot_grp = xd_ref[0]                                  # (Cin, 8*W2)

    # Row just above / below the band.  The index_map already clamped the
    # 8-row group at the image top/bottom; the first/last band re-selects the
    # edge row itself, which is exactly replicate padding along H.
    top_row = jnp.where(b > 0, top_grp[:, 7 * W2:8 * W2], top_grp[:, 0:W2])
    bot_row = jnp.where(b < nb - 1, bot_grp[:, 0:W2], bot_grp[:, 7 * W2:8 * W2])

    # Extended band (rows -1 .. TR) lives in the middle Cin rows of the scratch.
    sc_ref[Cin:2 * Cin, 0:W2] = top_row
    sc_ref[Cin:2 * Cin, W2:W2 + BL] = band
    sc_ref[Cin:2 * Cin, W2 + BL:EXT] = bot_row
    ext = sc_ref[Cin:2 * Cin, :]                          # (Cin, EXT)

    # Mod-free column-boundary masks ((1, EXT), broadcast in the selects).
    col = col_ref[...]
    first_col = col == 0
    last_col = col == (W2 - 1)

    # Column taps via lane rotation + replicate fix, stacked along sublanes so
    # each kh row of the conv reads one contiguous (3*Cin, BL) slice.
    sc_ref[0:Cin, :] = jnp.where(first_col, ext, _roll_lanes(ext, 1))          # kw = 0
    sc_ref[2 * Cin:3 * Cin, :] = jnp.where(last_col, ext, _roll_lanes(ext, -1))  # kw = 2

    # Streamed accumulation: 3 small matmuls (K = 3*Cin), no (9*Cin, L)
    # im2col buffer.  TODO(synk): optionally cast the matmul operands to
    # bfloat16 (keep f32 accumulation) to halve scratch/load traffic.
    acc = None
    for t in range(3):                                    # t = kh, dh = t - 1
        rhs = sc_ref[:, t * W2:t * W2 + BL]               # (3*Cin, BL)
        part = jnp.dot(w_ref[t], rhs, preferred_element_type=jnp.float32)
        acc = part if acc is None else acc + part

    acc = acc + b_ref[...]
    acc = jnp.maximum(acc, 0.0)
    o_ref[...] = acc.reshape(1, Cout, BL).astype(o_ref.dtype)


def _pixel_shuffle_nchw(x, r):
    """PyTorch nn.PixelShuffle(r) semantics on NCHW."""
    N, C, H, W = x.shape
    Co = C // (r * r)
    x = x.reshape(N, Co, r, r, H, W)
    x = x.transpose(0, 1, 4, 2, 5, 3)                     # (N, Co, H, r, W, r)
    return x.reshape(N, Co, H * r, W * r)


def _pick_band_rows(H2, W2, target_elems=64 * 1024):
    """Largest band height (multiple of 8, divides H2) whose flattened size
    stays under target_elems, preferring >= 2 bands so both v7x TCs get work."""
    cands = [tr for tr in range(8, H2 + 1, 8) if H2 % tr == 0]
    fits = [tr for tr in cands if tr * W2 <= target_elems]
    two_bands = [tr for tr in fits if (H2 // tr) >= 2]
    if two_bands:
        return max(two_bands)
    if fits:
        return max(fits)
    return cands[0]


def go_up_pixel(x_nchw, weight_oihw, bias):
    """Forward pass of goUp_pixel.

    x_nchw      : (N, C, H, W) float32
    weight_oihw : (Cout, C//4, 3, 3) float32   (PyTorch Conv2d layout)
    bias        : (Cout,) float32
    returns     : (N, Cout, 2H, 2W) float32
    """
    N, C, H, W = x_nchw.shape
    assert C % 4 == 0, "dims_in must be divisible by 4"
    Cin = C // 4
    Cout = weight_oihw.shape[0]
    H2, W2 = 2 * H, 2 * W
    L = H2 * W2

    # Blocking constraints of this kernel (128-lane / 8-sublane alignment).
    assert H2 % 8 == 0, "need H % 4 == 0"
    assert (8 * W2) % 128 == 0, "need W % 8 == 0"

    TR = _pick_band_rows(H2, W2)
    nb = H2 // TR
    BL = TR * W2
    EXT = BL + 2 * W2
    tpg = TR // 8                        # 8-row halo groups per band
    ng = H2 // 8                         # total 8-row groups per image

    # --- layout glue: PixelShuffle(2) + flatten (single XLA copy). ---
    # TODO(synk): fold PixelShuffle(2) into the conv (sub-pixel convolution
    # identity: 4 rearranged weight phases on the un-shuffled input) to remove
    # this remaining HBM pass; the interleaved output store it requires is
    # left out of this version.
    xs = _pixel_shuffle_nchw(x_nchw, 2).reshape(N, Cin, L)

    # Weights grouped by kh: w3[kh, co, kw*Cin + ci] = weight[co, ci, kh, kw].
    w3 = weight_oihw.transpose(2, 0, 3, 1).reshape(3, Cout, 3 * Cin)
    b_col = bias.reshape(Cout, 1)
    col_id = (jnp.arange(EXT, dtype=jnp.int32) % jnp.int32(W2)).reshape(1, EXT)

    kernel = functools.partial(_conv3x3_relu_band_kernel,
                               TR=TR, W2=W2, Cin=Cin, Cout=Cout)

    in_specs = [
        pl.BlockSpec((1, EXT), lambda n, b: (0, 0)),                       # col ids
        pl.BlockSpec((1, Cin, BL), lambda n, b: (n, 0, b)),                # band
        pl.BlockSpec((1, Cin, 8 * W2),                                     # halo above
                     lambda n, b: (n, 0, jnp.maximum(b * tpg - 1, 0))),
        pl.BlockSpec((1, Cin, 8 * W2),                                     # halo below
                     lambda n, b: (n, 0, jnp.minimum((b + 1) * tpg, ng - 1))),
        pl.BlockSpec((3, Cout, 3 * Cin), lambda n, b: (0, 0, 0)),          # weights
        pl.BlockSpec((Cout, 1), lambda n, b: (0, 0)),                      # bias
    ]
    out_specs = pl.BlockSpec((1, Cout, BL), lambda n, b: (n, 0, b))

    # VMEM budget: double-buffered band + halos + output, the column-shift
    # scratch, and headroom for in-flight temporaries.
    est = 4 * (2 * Cin * BL + 4 * Cin * 8 * W2 + 2 * Cout * BL
               + 3 * Cin * EXT + EXT + (3 * Cin + 2 * Cout) * EXT)
    vmem_limit = int(min(max(2 * est, 4 << 20), 48 << 20))

    out_flat = pl.pallas_call(
        kernel,
        out_shape=jax.ShapeDtypeStruct((N, Cout, L), x_nchw.dtype),
        grid_spec=pltpu.PrefetchScalarGridSpec(
            num_scalar_prefetch=0,
            grid=(N, nb),
            in_specs=in_specs,
            out_specs=out_specs,
            scratch_shapes=[pltpu.VMEM((3 * Cin, EXT), jnp.float32)],
        ),
        compiler_params=pltpu.CompilerParams(
            dimension_semantics=("parallel", "parallel"),
            vmem_limit_bytes=vmem_limit,
        ),
    )(col_id, xs, xs, xs, w3, b_col)

    # Metadata-only reshape back to NCHW.
    return out_flat.reshape(N, Cout, H2, W2)


def _reference(x_nchw, weight_oihw, bias):
    """Pure-JAX reference: PixelShuffle(2) -> replicate-pad 3x3 conv -> ReLU."""
    xs = _pixel_shuffle_nchw(x_nchw, 2)
    xp = jnp.pad(xs, ((0, 0), (0, 0), (1, 1), (1, 1)), mode="edge")
    out = lax.conv_general_dilated(
        xp, weight_oihw, window_strides=(1, 1), padding="VALID",
        dimension_numbers=("NCHW", "OIHW", "NCHW"),
        precision=lax.Precision.HIGHEST)
    return jnp.maximum(out + bias.reshape(1, -1, 1, 1), 0.0)


if __name__ == "__main__":
    # Small shapes consistent with the module: dims_in must be divisible by 4.
    N, dims_in, H, W = 2, 16, 16, 16
    dims_out = 8
    cin_conv = dims_in // 4

    key = jax.random.PRNGKey(0)
    kx, kw, kb = jax.random.split(key, 3)

    x = jax.random.normal(kx, (N, dims_in, H, W), dtype=jnp.float32)
    weight = 0.1 * jax.random.normal(
        kw, (dims_out, cin_conv, 3, 3), dtype=jnp.float32)
    bias = 0.1 * jax.random.normal(kb, (dims_out,), dtype=jnp.float32)

    y = go_up_pixel(x, weight, bias)
    jax.block_until_ready(y)

    assert y.shape == (N, dims_out, 2 * H, 2 * W), y.shape
    assert bool(jnp.all(y >= 0.0))  # ReLU output is non-negative

    # Numerical check against a pure-JAX reference of the PyTorch module.
    y_ref = _reference(x, weight, bias)
    max_err = float(jnp.max(jnp.abs(y - y_ref)))
    assert max_err < 3e-2, f"max abs error {max_err}"

    print("KERNEL_OK")
</pallas_src>

<mosaic_0001>
module attributes {stable_mosaic.version = 11 : i64} {
  func.func @_conv3x3_relu_band_kernel(%arg0: i32, %arg1: i32, %arg2: memref<1x576xi32, #tpu.memory_space<vmem>>, %arg3: memref<1x4x512xf32, #tpu.memory_space<vmem>>, %arg4: memref<1x4x256xf32, #tpu.memory_space<vmem>>, %arg5: memref<1x4x256xf32, #tpu.memory_space<vmem>>, %arg6: memref<3x8x12xf32, #tpu.memory_space<vmem>>, %arg7: memref<8x1xf32, #tpu.memory_space<vmem>>, %arg8: memref<1x8x512xf32, #tpu.memory_space<vmem>>, %arg9: memref<12x576xf32, #tpu.memory_space<vmem>>) attributes {dimension_semantics = [#tpu.dimension_semantics<parallel>, #tpu.dimension_semantics<parallel>], iteration_bounds = array<i64: 2, 2>, scalar_prefetch = 0 : i64, scratch_operands = 1 : i64, tpu.core_type = #tpu.core_type<tc>, window_params = [{pipeline_mode = #tpu.pipeline_mode<synchronous>, transform_indices = @transform_0, window_bounds = array<i64: 1, 576>}, {transform_indices = @transform_1, window_bounds = array<i64: 1, 4, 512>}, {transform_indices = @transform_2, window_bounds = array<i64: 1, 4, 256>}, {transform_indices = @transform_3, window_bounds = array<i64: 1, 4, 256>}, {pipeline_mode = #tpu.pipeline_mode<synchronous>, transform_indices = @transform_4, window_bounds = array<i64: 3, 8, 12>}, {pipeline_mode = #tpu.pipeline_mode<synchronous>, transform_indices = @transform_5, window_bounds = array<i64: 8, 1>}, {transform_indices = @transform_6, window_bounds = array<i64: 1, 8, 512>}]} {
    %c0 = arith.constant 0 : index
    %c0_0 = arith.constant 0 : index
    %c0_1 = arith.constant 0 : index
    %0 = vector.load %arg3[%c0, %c0_0, %c0_1] : memref<1x4x512xf32, #tpu.memory_space<vmem>>, vector<1x4x512xf32>
    %1 = vector.shape_cast %0 : vector<1x4x512xf32> to vector<4x512xf32>
    %c0_2 = arith.constant 0 : index
    %c0_3 = arith.constant 0 : index
    %c0_4 = arith.constant 0 : index
    %2 = vector.load %arg4[%c0_2, %c0_3, %c0_4] : memref<1x4x256xf32, #tpu.memory_space<vmem>>, vector<1x4x256xf32>
    %3 = vector.shape_cast %2 : vector<1x4x256xf32> to vector<4x256xf32>
    %c0_5 = arith.constant 0 : index
    %c0_6 = arith.constant 0 : index
    %c0_7 = arith.constant 0 : index
    %4 = vector.load %arg5[%c0_5, %c0_6, %c0_7] : memref<1x4x256xf32, #tpu.memory_space<vmem>>, vector<1x4x256xf32>
    %5 = vector.shape_cast %4 : vector<1x4x256xf32> to vector<4x256xf32>
    %c0_i32 = arith.constant 0 : i32
    %6 = arith.cmpi sgt, %arg1, %c0_i32 : i32
    %7 = vector.extract_strided_slice %3 {offsets = [0, 224], sizes = [4, 32], strides = [1, 1]} : vector<4x256xf32> to vector<4x32xf32>
    %8 = vector.extract_strided_slice %3 {offsets = [0, 0], sizes = [4, 32], strides = [1, 1]} : vector<4x256xf32> to vector<4x32xf32>
    %9 = arith.select %6, %7, %8 : vector<4x32xf32>
    %c1_i32 = arith.constant 1 : i32
    %10 = arith.cmpi slt, %arg1, %c1_i32 : i32
    %11 = vector.extract_strided_slice %5 {offsets = [0, 0], sizes = [4, 32], strides = [1, 1]} : vector<4x256xf32> to vector<4x32xf32>
    %12 = vector.extract_strided_slice %5 {offsets = [0, 224], sizes = [4, 32], strides = [1, 1]} : vector<4x256xf32> to vector<4x32xf32>
    %13 = arith.select %10, %11, %12 : vector<4x32xf32>
    %c4 = arith.constant 4 : index
    %c0_8 = arith.constant 0 : index
    %14 = vector.load %arg9[%c4, %c0_8] : memref<12x576xf32, #tpu.memory_space<vmem>>, vector<4x32xf32>
    tpu.vector_store %arg9[%c4, %c0_8], %9 {strides = array<i32>} : memref<12x576xf32, #tpu.memory_space<vmem>>, vector<4x32xf32>,
    %c4_9 = arith.constant 4 : index
    %c32 = arith.constant 32 : index
    %15 = vector.load %arg9[%c4_9, %c32] : memref<12x576xf32, #tpu.memory_space<vmem>>, vector<4x512xf32>
    tpu.vector_store %arg9[%c4_9, %c32], %1 {strides = array<i32>} : memref<12x576xf32, #tpu.memory_space<vmem>>, vector<4x512xf32>,
    %c4_10 = arith.constant 4 : index
    %c544 = arith.constant 544 : index
    %16 = vector.load %arg9[%c4_10, %c544] : memref<12x576xf32, #tpu.memory_space<vmem>>, vector<4x32xf32>
    tpu.vector_store %arg9[%c4_10, %c544], %13 {strides = array<i32>} : memref<12x576xf32, #tpu.memory_space<vmem>>, vector<4x32xf32>,
    %c4_11 = arith.constant 4 : index
    %c0_12 = arith.constant 0 : index
    %17 = vector.load %arg9[%c4_11, %c0_12] : memref<12x576xf32, #tpu.memory_space<vmem>>, vector<4x576xf32>
    %c0_13 = arith.constant 0 : index
    %c0_14 = arith.constant 0 : index
    %18 = vector.load %arg2[%c0_13, %c0_14] : memref<1x576xi32, #tpu.memory_space<vmem>>, vector<1x576xi32>
    %c0_i32_15 = arith.constant 0 : i32
    %19 = vector.broadcast %c0_i32_15 : i32 to vector<1x576xi32>
    %20 = arith.cmpi eq, %18, %19 : vector<1x576xi32>
    %c31_i32 = arith.constant 31 : i32
    %21 = vector.broadcast %c31_i32 : i32 to vector<1x576xi32>
    %22 = arith.cmpi eq, %18, %21 : vector<1x576xi32>
    %23 = vector.extract_strided_slice %17 {offsets = [0, 575], sizes = [4, 1], strides = [1, 1]} : vector<4x576xf32> to vector<4x1xf32>
    %24 = vector.extract_strided_slice %17 {offsets = [0, 0], sizes = [4, 575], strides = [1, 1]} : vector<4x576xf32> to vector<4x575xf32>
    %25 = tpu.concatenate %23, %24 in 1 : vector<4x1xf32>, vector<4x575xf32> -> vector<4x576xf32>
    %26 = vector.shape_cast %20 : vector<1x576xi1> to vector<1x576xi1>
    %27 = vector.broadcast %26 : vector<1x576xi1> to vector<4x576xi1>
    %28 = arith.select %27, %17, %25 : vector<4x576xi1>, vector<4x576xf32>
    %c0_16 = arith.constant 0 : index
    %c0_17 = arith.constant 0 : index
    %29 = vector.load %arg9[%c0_16, %c0_17] : memref<12x576xf32, #tpu.memory_space<vmem>>, vector<4x576xf32>
    tpu.vector_store %arg9[%c0_16, %c0_17], %28 {strides = array<i32>} : memref<12x576xf32, #tpu.memory_space<vmem>>, vector<4x576xf32>,
    %30 = vector.extract_strided_slice %17 {offsets = [0, 1], sizes = [4, 575], strides = [1, 1]} : vector<4x576xf32> to vector<4x575xf32>
    %31 = vector.extract_strided_slice %17 {offsets = [0, 0], sizes = [4, 1], strides = [1, 1]} : vector<4x576xf32> to vector<4x1xf32>
    %32 = tpu.concatenate %30, %31 in 1 : vector<4x575xf32>, vector<4x1xf32> -> vector<4x576xf32>
    %33 = vector.shape_cast %22 : vector<1x576xi1> to vector<1x576xi1>
    %34 = vector.broadcast %33 : vector<1x576xi1> to vector<4x576xi1>
    %35 = arith.select %34, %17, %32 : vector<4x576xi1>, vector<4x576xf32>
    %c8 = arith.constant 8 : index
    %c0_18 = arith.constant 0 : index
    %36 = vector.load %arg9[%c8, %c0_18] : memref<12x576xf32, #tpu.memory_space<vmem>>, vector<4x576xf32>
    tpu.vector_store %arg9[%c8, %c0_18], %35 {strides = array<i32>} : memref<12x576xf32, #tpu.memory_space<vmem>>, vector<4x576xf32>,
    %c0_19 = arith.constant 0 : index
    %c0_20 = arith.constant 0 : index
    %37 = vector.load %arg9[%c0_19, %c0_20] : memref<12x576xf32, #tpu.memory_space<vmem>>, vector<12x512xf32>
    %c0_21 = arith.constant 0 : index
    %c0_22 = arith.constant 0 : index
    %c0_23 = arith.constant 0 : index
    %38 = vector.load %arg6[%c0_21, %c0_22, %c0_23] : memref<3x8x12xf32, #tpu.memory_space<vmem>>, vector<1x8x12xf32>
    %39 = vector.shape_cast %38 : vector<1x8x12xf32> to vector<8x12xf32>
    %cst = arith.constant dense<0.000000e+00> : vector<8x512xf32>
    %40 = tpu.matmul %39, %37, %cst {dimension_numbers = #tpu.dot_dimension_numbers<[1], [0], [0], [1], [0, 0, 1, 1], [], []>} : vector<8x12xf32>, vector<12x512xf32>, vector<8x512xf32> -> vector<8x512xf32>
    %c0_24 = arith.constant 0 : index
    %c32_25 = arith.constant 32 : index
    %41 = vector.load %arg9[%c0_24, %c32_25] : memref<12x576xf32, #tpu.memory_space<vmem>>, vector<12x512xf32>
    %c1 = arith.constant 1 : index
    %c0_26 = arith.constant 0 : index
    %c0_27 = arith.constant 0 : index
    %42 = vector.load %arg6[%c1, %c0_26, %c0_27] : memref<3x8x12xf32, #tpu.memory_space<vmem>>, vector<1x8x12xf32>
    %43 = vector.shape_cast %42 : vector<1x8x12xf32> to vector<8x12xf32>
    %cst_28 = arith.constant dense<0.000000e+00> : vector<8x512xf32>
    %44 = tpu.matmul %43, %41, %cst_28 {dimension_numbers = #tpu.dot_dimension_numbers<[1], [0], [0], [1], [0, 0, 1, 1], [], []>} : vector<8x12xf32>, vector<12x512xf32>, vector<8x512xf32> -> vector<8x512xf32>
    %45 = arith.addf %40, %44 : vector<8x512xf32>
    %c0_29 = arith.constant 0 : index
    %c64 = arith.constant 64 : index
    %46 = vector.load %arg9[%c0_29, %c64] : memref<12x576xf32, #tpu.memory_space<vmem>>, vector<12x512xf32>
    %c2 = arith.constant 2 : index
    %c0_30 = arith.constant 0 : index
    %c0_31 = arith.constant 0 : index
    %47 = vector.load %arg6[%c2, %c0_30, %c0_31] : memref<3x8x12xf32, #tpu.memory_space<vmem>>, vector<1x8x12xf32>
    %48 = vector.shape_cast %47 : vector<1x8x12xf32> to vector<8x12xf32>
    %cst_32 = arith.constant dense<0.000000e+00> : vector<8x512xf32>
    %49 = tpu.matmul %48, %46, %cst_32 {dimension_numbers = #tpu.dot_dimension_numbers<[1], [0], [0], [1], [0, 0, 1, 1], [], []>} : vector<8x12xf32>, vector<12x512xf32>, vector<8x512xf32> -> vector<8x512xf32>
    %50 = arith.addf %45, %49 : vector<8x512xf32>
    %c0_33 = arith.constant 0 : index
    %c0_34 = arith.constant 0 : index
    %51 = vector.load %arg7[%c0_33, %c0_34] : memref<8x1xf32, #tpu.memory_space<vmem>>, vector<8x1xf32>
    %52 = vector.broadcast %51 : vector<8x1xf32> to vector<8x512xf32>
    %53 = arith.addf %50, %52 : vector<8x512xf32>
    %cst_35 = arith.constant 0.000000e+00 : f32
    %54 = vector.broadcast %cst_35 : f32 to vector<8x512xf32>
    %55 = arith.maximumf %53, %54 : vector<8x512xf32>
    %56 = vector.shape_cast %55 : vector<8x512xf32> to vector<1x8x512xf32>
    %c0_36 = arith.constant 0 : index
    %c0_37 = arith.constant 0 : index
    %c0_38 = arith.constant 0 : index
    %57 = vector.load %arg8[%c0_36, %c0_37, %c0_38] : memref<1x8x512xf32, #tpu.memory_space<vmem>>, vector<1x8x512xf32>
    tpu.vector_store %arg8[%c0_36, %c0_37, %c0_38], %56 {strides = array<i32>} : memref<1x8x512xf32, #tpu.memory_space<vmem>>, vector<1x8x512xf32>,
    return
  }
  func.func @transform_0(%arg0: i32, %arg1: i32) -> (i32, i32) {
    %c0_i32 = arith.constant 0 : i32
    %c0_i32_0 = arith.constant 0 : i32
    %c0_i32_1 = arith.constant 0 : i32
    return %c0_i32, %c0_i32_0 : i32, i32
  }
  func.func @transform_1(%arg0: i32, %arg1: i32) -> (i32, i32, i32) {
    %c0_i32 = arith.constant 0 : i32
    %c0_i32_0 = arith.constant 0 : i32
    return %arg0, %c0_i32, %arg1 : i32, i32, i32
  }
  func.func @transform_2(%arg0: i32, %arg1: i32) -> (i32, i32, i32) {
    %c2_i32 = arith.constant 2 : i32
    %0 = arith.muli %arg1, %c2_i32 : i32
    %c1_i32 = arith.constant 1 : i32
    %1 = arith.subi %0, %c1_i32 : i32
    %c0_i32 = arith.constant 0 : i32
    %2 = arith.maxsi %1, %c0_i32 : i32
    %c0_i32_0 = arith.constant 0 : i32
    %c0_i32_1 = arith.constant 0 : i32
    return %arg0, %c0_i32_0, %2 : i32, i32, i32
  }
  func.func @transform_3(%arg0: i32, %arg1: i32) -> (i32, i32, i32) {
    %c1_i32 = arith.constant 1 : i32
    %0 = arith.addi %arg1, %c1_i32 : i32
    %c2_i32 = arith.constant 2 : i32
    %1 = arith.muli %0, %c2_i32 : i32
    %c3_i32 = arith.constant 3 : i32
    %2 = arith.minsi %1, %c3_i32 : i32
    %c0_i32 = arith.constant 0 : i32
    %c0_i32_0 = arith.constant 0 : i32
    return %arg0, %c0_i32, %2 : i32, i32, i32
  }
  func.func @transform_4(%arg0: i32, %arg1: i32) -> (i32, i32, i32) {
    %c0_i32 = arith.constant 0 : i32
    %c0_i32_0 = arith.constant 0 : i32
    %c0_i32_1 = arith.constant 0 : i32
    %c0_i32_2 = arith.constant 0 : i32
    return %c0_i32, %c0_i32_0, %c0_i32_1 : i32, i32, i32
  }
  func.func @transform_5(%arg0: i32, %arg1: i32) -> (i32, i32) {
    %c0_i32 = arith.constant 0 : i32
    %c0_i32_0 = arith.constant 0 : i32
    %c0_i32_1 = arith.constant 0 : i32
    return %c0_i32, %c0_i32_0 : i32, i32
  }
  func.func @transform_6(%arg0: i32, %arg1: i32) -> (i32, i32, i32) {
    %c0_i32 = arith.constant 0 : i32
    %c0_i32_0 = arith.constant 0 : i32
    return %arg0, %c0_i32, %arg1 : i32, i32, i32
  }
}

</mosaic_0001>

<llo_original>
// kernel: tpu_custom_call.1
$region0: #{tpu_custom_call.1}
  #allocation0 [shape = 'u32[]', space=smem, size = 0x4, offset = 0x4, fixed_abs, tag = 'smem constant byte address 0x4 - core index']
  #allocation1 [shape = 'u32[72,128]{1,0:T(1,128)}', space=vmem, size = 0x9000, scoped, tag = 'internal scratch']
  #allocation2 [shape = 'f32[12,576]{1,0:T(8,128)}', space=vmem, size = 0xa000, scoped, tag = 'scratch operand']
  %s0 = inlined_call_operand.vmem [shape: s32[1,576], index: 0, kind: input, shape index: {}]
  %s1 = inlined_call_operand.hbm [shape: f32[2,4,1024], index: 1, kind: input, shape index: {}]
  %s2 = inlined_call_operand.hbm [shape: f32[2,4,1024], index: 2, kind: input, shape index: {}]
  %s3 = inlined_call_operand.hbm [shape: f32[2,4,1024], index: 3, kind: input, shape index: {}]
  %s4 = inlined_call_operand.hbm [shape: f32[3,8,12], index: 4, kind: input, shape index: {}]
  %s5 = inlined_call_operand.vmem [shape: f32[8,1], index: 5, kind: input, shape index: {}]
  %s6 = inlined_call_operand.hbm [shape: f32[2,8,1024], index: 6, kind: output, shape index: {}]
  %s7 = sld [smem:[#allocation0]]
  $region73: #{tpu_custom_call.1} parent=0
    _
  %s9 = ssub.s32 1, %s7
  %s10 = scalar_select 0, %s9, %s7
  $region1: #{tpu_custom_call.1} parent=0
    #allocation3 [shape = 'u8[16384]{0}', space=vmem, size = 0x4000, scoped, tag = 'input window, operand 1']
    #allocation4 [shape = 's32[2]{0}', space=sflag, size = 0x8, scoped, tag = 'scoped memory for tpu_custom_call.1']
    #allocation5 [shape = 's32[2]{0}', space=sflag, size = 0x8, scoped, tag = 'scoped memory for tpu_custom_call.1']
    #allocation6 [shape = 'u8[8192]{0}', space=vmem, size = 0x2000, scoped, tag = 'input window, operand 2']
    #allocation7 [shape = 's32[2]{0}', space=sflag, size = 0x8, scoped, tag = 'scoped memory for tpu_custom_call.1']
    #allocation8 [shape = 'u8[8192]{0}', space=vmem, size = 0x2000, scoped, tag = 'input window, operand 3']
    #allocation9 [shape = 'u8[12288]{0}', space=vmem, size = 0x3000, scoped, tag = 'input window, operand 4, single buffered']
    #allocation10 [shape = 's32[1]{0}', space=sflag, size = 0x4, scoped, tag = 'scoped memory for tpu_custom_call.1']
    #allocation11 [shape = 'u8[32768]{0}', space=vmem, size = 0x8000, scoped, tag = 'output window, operand 0']
    %11 = vsyncpa [#allocation4], 0
    %s12 = scalar_lea.sflag [#allocation4], 1
    %13 = vsyncpa %s12, 0
    %14 = vsyncpa [#allocation7], 0
    %s15 = scalar_lea.sflag [#allocation7], 1
    %16 = vsyncpa %s15, 0
    %17 = vsyncpa [#allocation10], 0
    %18 = vsyncpa [#allocation5], 0
    %s19 = scalar_lea.sflag [#allocation5], 1
    %20 = vsyncpa %s19, 0
    loop: start=0, step=1, limit=6
    $region2: #{tpu_custom_call.1} parent=1 // loop_pre_header
      _
    $region3: #{tpu_custom_call.1} parent=1 // loop_header
      %s22 = sphi 0, %s26
      %p23 = scmp.ge.s32.totalorder %s22, 6
      %s29 = sphi 0, %s41
      %s30 = sphi 0, %s37
      %s31 = sphi 0, %s29
      %s32 = sphi 0, %s30
      %s33 = sphi 0, %s31
      %s34 = sphi 0, %s32
      %s42 = sphi 0, %s42
      %s44 = sphi 0, %s42
      %s45 = sphi 0, %s44
      %s59 = sphi 0, %s45
      %s67 = sphi 0, %s69
      %s70 = sphi 0, %s67
      %s71 = sphi 0, %s70
      %s87 = sphi 0, %s71
      %s103 = sphi 0, %s105
      %s106 = sphi 0, %s103
      %s107 = sphi 0, %s106
      %s123 = sphi 0, %s107
      %s139 = sphi 0, %s141
      %s142 = sphi 0, %s139
      %s143 = sphi 0, %s142
      %s159 = sphi 0, %s143
      %s163 = sphi 0, %s163
      %s165 = sphi 0, %s163
      %s166 = sphi 0, %s165
      %s180 = sphi 0, %s166
      %s184 = sphi 0, %s184
      %s186 = sphi 0, %s184
      %s187 = sphi 0, %s186
      %s201 = sphi 0, %s187
      %s209 = sphi 0, %s211
      %s212 = sphi 0, %s209
      %s213 = sphi 0, %s212
      %s229 = sphi 0, %s213
    $region4: #{tpu_custom_call.1} parent=1 // loop_header_branch
      %25 = sbr.rel (%p23) target = $region8
    $region5: #{tpu_custom_call.1} parent=1 // loop_body
      %s27 = ssub.s32 %s22, 1
      %s28 = ssub.s32 %s22, 2
      %s35 = sadd.s32 1, %s30
      %p36 = scmp.ge.s32.totalorder %s35, 2
      %s37 = scalar_select %p36, 0, %s35
      %s38 = sadd.s32 1, %s29
      %s39 = scalar_select %p36, %s38, %s29
      %p40 = scmp.ge.s32.totalorder %s39, 2
      %s41 = scalar_select %p40, 0, %s39
      %s43 = sadd.s32 %s42, 1
      %p46 = scmp.eq.s32.totalorder %s22, 3
      %p47 = scmp.ne.s32.totalorder %s42, %s44
      %p48 = scmp.eq.s32.totalorder %s22, 0
      %p49 = por %p47, %p48
      %p50 = scmp.ne.s32.totalorder %s42, %s44
      %p51 = scmp.eq.s32.totalorder %s27, 3
      %p52 = por %p50, %p51
      %p53 = scmp.ne.s32.totalorder %s44, %s45
      %p54 = scmp.eq.s32.totalorder %s27, 0
      %p55 = por %p53, %p54
      %p56 = scmp.ne.s32.totalorder %s44, %s45
      %p57 = scmp.eq.s32.totalorder %s28, 3
      %p58 = por %p56, %p57
      %p60 = scmp.ne.s32.totalorder %s45, %s59
      %p61 = scmp.eq.s32.totalorder %s28, 0
      %p62 = por %p60, %p61
      %s63 = ssub.s32 %s29, %s41
      %s64 = ssub.s32 %s30, %s37
      %s65 = sor.u32 %s63, %s64
      %p66 = scmp.eq.s32.totalorder %s65, 0
      %s68 = sadd.s32 %s67, 1
      %s69 = scalar_select %p66, %s67, %s68
      %p72 = pneg %p66
      %p73 = scmp.eq.s32.totalorder %s22, 3
      %p74 = por %p72, %p73
      %p75 = scmp.ne.s32.totalorder %s67, %s70
      %p76 = scmp.eq.s32.totalorder %s22, 0
      %p77 = por %p75, %p76
      %p78 = scmp.ne.s32.totalorder %s67, %s70
      %p79 = scmp.eq.s32.totalorder %s27, 3
      %p80 = por %p78, %p79
      %p81 = scmp.ne.s32.totalorder %s70, %s71
      %p82 = scmp.eq.s32.totalorder %s27, 0
      %p83 = por %p81, %p82
      %p84 = scmp.ne.s32.totalorder %s70, %s71
      %p85 = scmp.eq.s32.totalorder %s28, 3
      %p86 = por %p84, %p85
      %p88 = scmp.ne.s32.totalorder %s71, %s87
      %p89 = scmp.eq.s32.totalorder %s28, 0
      %p90 = por %p88, %p89
      %s91 = smul.u32 %s30, 2
      %s92 = ssub.s32 %s91, 1
      %p93 = scmp.gt.s32.totalorder %s92, 0
      %s94 = scalar_select %p93, %s92, 0
      %s95 = smul.u32 %s37, 2
      %s96 = ssub.s32 %s95, 1
      %p97 = scmp.gt.s32.totalorder %s96, 0
      %s98 = scalar_select %p97, %s96, 0
      %s99 = ssub.s32 %s29, %s41
      %s100 = ssub.s32 %s94, %s98
      %s101 = sor.u32 %s99, %s100
      %p102 = scmp.eq.s32.totalorder %s101, 0
      %s104 = sadd.s32 %s103, 1
      %s105 = scalar_select %p102, %s103, %s104
      %p108 = pneg %p102
      %p109 = scmp.eq.s32.totalorder %s22, 3
      %p110 = por %p108, %p109
      %p111 = scmp.ne.s32.totalorder %s103, %s106
      %p112 = scmp.eq.s32.totalorder %s22, 0
      %p113 = por %p111, %p112
      %p114 = scmp.ne.s32.totalorder %s103, %s106
      %p115 = scmp.eq.s32.totalorder %s27, 3
      %p116 = por %p114, %p115
      %p117 = scmp.ne.s32.totalorder %s106, %s107
      %p118 = scmp.eq.s32.totalorder %s27, 0
      %p119 = por %p117, %p118
      %p120 = scmp.ne.s32.totalorder %s106, %s107
      %p121 = scmp.eq.s32.totalorder %s28, 3
      %p122 = por %p120, %p121
      %p124 = scmp.ne.s32.totalorder %s107, %s123
      %p125 = scmp.eq.s32.totalorder %s28, 0
      %p126 = por %p124, %p125
      %s127 = sadd.s32 %s30, 1
      %s128 = smul.u32 %s127, 2
      %p129 = scmp.lt.s32.totalorder %s128, 3
      %s130 = scalar_select %p129, %s128, 3
      %s131 = sadd.s32 %s37, 1
      %s132 = smul.u32 %s131, 2
      %p133 = scmp.lt.s32.totalorder %s132, 3
      %s134 = scalar_select %p133, %s132, 3
      %s135 = ssub.s32 %s29, %s41
      %s136 = ssub.s32 %s130, %s134
      %s137 = sor.u32 %s135, %s136
      %p138 = scmp.eq.s32.totalorder %s137, 0
      %s140 = sadd.s32 %s139, 1
      %s141 = scalar_select %p138, %s139, %s140
      %p144 = pneg %p138
      %p145 = scmp.eq.s32.totalorder %s22, 3
      %p146 = por %p144, %p145
      %p147 = scmp.ne.s32.totalorder %s139, %s142
      %p148 = scmp.eq.s32.totalorder %s22, 0
      %p149 = por %p147, %p148
      %p150 = scmp.ne.s32.totalorder %s139, %s142
      %p151 = scmp.eq.s32.totalorder %s27, 3
      %p152 = por %p150, %p151
      %p153 = scmp.ne.s32.totalorder %s142, %s143
      %p154 = scmp.eq.s32.totalorder %s27, 0
      %p155 = por %p153, %p154
      %p156 = scmp.ne.s32.totalorder %s142, %s143
      %p157 = scmp.eq.s32.totalorder %s28, 3
      %p158 = por %p156, %p157
      %p160 = scmp.ne.s32.totalorder %s143, %s159
      %p161 = scmp.eq.s32.totalorder %s28, 0
      %p162 = por %p160, %p161
      %s164 = sadd.s32 %s163, 1
      %p167 = scmp.eq.s32.totalorder %s22, 3
      %p168 = scmp.ne.s32.totalorder %s163, %s165
      %p169 = scmp.eq.s32.totalorder %s22, 0
      %p170 = por %p168, %p169
      %p171 = scmp.ne.s32.totalorder %s163, %s165
      %p172 = scmp.eq.s32.totalorder %s27, 3
      %p173 = por %p171, %p172
      %p174 = scmp.ne.s32.totalorder %s165, %s166
      %p175 = scmp.eq.s32.totalorder %s27, 0
      %p176 = por %p174, %p175
      %p177 = scmp.ne.s32.totalorder %s165, %s166
      %p178 = scmp.eq.s32.totalorder %s28, 3
      %p179 = por %p177, %p178
      %p181 = scmp.ne.s32.totalorder %s166, %s180
      %p182 = scmp.eq.s32.totalorder %s28, 0
      %p183 = por %p181, %p182
      %s185 = sadd.s32 %s184, 1
      %p188 = scmp.eq.s32.totalorder %s22, 3
      %p189 = scmp.ne.s32.totalorder %s184, %s186
      %p190 = scmp.eq.s32.totalorder %s22, 0
      %p191 = por %p189, %p190
      %p192 = scmp.ne.s32.totalorder %s184, %s186
      %p193 = scmp.eq.s32.totalorder %s27, 3
      %p194 = por %p192, %p193
      %p195 = scmp.ne.s32.totalorder %s186, %s187
      %p196 = scmp.eq.s32.totalorder %s27, 0
      %p197 = por %p195, %p196
      %p198 = scmp.ne.s32.totalorder %s186, %s187
      %p199 = scmp.eq.s32.totalorder %s28, 3
      %p200 = por %p198, %p199
      %p202 = scmp.ne.s32.totalorder %s187, %s201
      %p203 = scmp.eq.s32.totalorder %s28, 0
      %p204 = por %p202, %p203
      %s205 = ssub.s32 %s29, %s41
      %s206 = ssub.s32 %s30, %s37
      %s207 = sor.u32 %s205, %s206
      %p208 = scmp.eq.s32.totalorder %s207, 0
      %s210 = sadd.s32 %s209, 1
      %s211 = scalar_select %p208, %s209, %s210
      %p214 = pneg %p208
      %p215 = scmp.eq.s32.totalorder %s22, 3
      %p216 = por %p214, %p215
      %p217 = scmp.ne.s32.totalorder %s209, %s212
      %p218 = scmp.eq.s32.totalorder %s22, 0
      %p219 = por %p217, %p218
      %p220 = scmp.ne.s32.totalorder %s209, %s212
      %p221 = scmp.eq.s32.totalorder %s27, 3
      %p222 = por %p220, %p221
      %p223 = scmp.ne.s32.totalorder %s212, %s213
      %p224 = scmp.eq.s32.totalorder %s27, 0
      %p225 = por %p223, %p224
      %p226 = scmp.ne.s32.totalorder %s212, %s213
      %p227 = scmp.eq.s32.totalorder %s28, 3
      %p228 = por %p226, %p227
      %p230 = scmp.ne.s32.totalorder %s213, %s229
      %p231 = scmp.eq.s32.totalorder %s28, 0
      %p232 = por %p230, %p231
      %p233 = scmp.le.s32.totalorder 1, %s22
      %p234 = scmp.lt.s32.totalorder %s22, 5
      %p235 = pnand %p233, %p234
      %p236 = pneg %p235
      // Predicated region
      $region9: #{tpu_custom_call.1} parent=5 // pred_check
        _
      $region10: #{tpu_custom_call.1} parent=5 // pred_check_branch
        %238 = sbr.rel (%p235) target = $region12
      $region11: #{tpu_custom_call.1} parent=5 // pred_region
        %s239 = ssub.s32 %s22, 1
        // Predicated region
        $region13: #{tpu_custom_call.1} parent=11 // pred_check
          %p240 = pneg %p55
        $region14: #{tpu_custom_call.1} parent=11 // pred_check_branch
          %242 = sbr.rel (%p240) target = $region16
        $region15: #{tpu_custom_call.1} parent=11 // pred_region
          _
        $region16: #{tpu_custom_call.1} parent=11 // pred_fallthru
          _
        // Predicated region
        $region17: #{tpu_custom_call.1} parent=11 // pred_check
          %p243 = pneg %p176
        $region18: #{tpu_custom_call.1} parent=11 // pred_check_branch
          %245 = sbr.rel (%p243) target = $region20
        $region19: #{tpu_custom_call.1} parent=11 // pred_region
          %247 = vsyncadd [#allocation10], 0
          %s248 = sshll.u32 %s4, 4
          %s249 = int_to_ptr.hbm [resolvable:$true] %s248
          %s250 = sshll.u32 [#allocation9], 4
          %s251 = int_to_ptr.vmem [resolvable:$true] %s250
          %256 = dma.hbm_to_vmem [thread:$0]  %s249, 384, %s251, [#allocation10], 128, 128, 8
        $region20: #{tpu_custom_call.1} parent=11 // pred_fallthru
          _
        // Predicated region
        $region21: #{tpu_custom_call.1} parent=11 // pred_check
          %p257 = pneg %p197
        $region22: #{tpu_custom_call.1} parent=11 // pred_check_branch
          %259 = sbr.rel (%p257) target = $region24
        $region23: #{tpu_custom_call.1} parent=11 // pred_region
          _
        $region24: #{tpu_custom_call.1} parent=11 // pred_fallthru
          _
      $region12: #{tpu_custom_call.1} parent=5 // pred_fallthru
        _
      %p260 = scmp.lt.s32.totalorder %s22, 4
      // Predicated region
      $region25: #{tpu_custom_call.1} parent=5 // pred_check
        %p261 = pneg %p260
      $region26: #{tpu_custom_call.1} parent=5 // pred_check_branch
        %263 = sbr.rel (%p261) target = $region28
      $region27: #{tpu_custom_call.1} parent=5 // pred_region
        // Predicated region
        $region29: #{tpu_custom_call.1} parent=27 // pred_check
          %p264 = pneg %p77
        $region30: #{tpu_custom_call.1} parent=27 // pred_check_branch
          %266 = sbr.rel (%p264) target = $region32
        $region31: #{tpu_custom_call.1} parent=27 // pred_region
          %s267 = sand.u32 %s67, 1
          %s268 = scalar_lea.sflag [#allocation4], %s267
          %s269 = sand.u32 %s67, 1
          %s270 = smul.addr %s269, 16
          %s271 = scalar_lea.vmem [#allocation3], %s270
          %s272 = smul.u32 4, %s30
          %274 = vsyncadd %s268, 0
          %s275 = smul.addr %s29, 8
          %s276 = sadd.s32 %s272, %s275
          %s277 = smul.addr %s276, 4
          %s278 = scalar_lea.hbm %s1, %s277
          %s280 = sshll.u32 %s278, 4
          %s281 = int_to_ptr.hbm [resolvable:$true] %s280
          %s282 = sshll.u32 %s271, 4
          %s283 = int_to_ptr.vmem [resolvable:$true] %s282
          %285 = dma.hbm_to_vmem [thread:$0]  %s281, 256, %s283, %s268
        $region32: #{tpu_custom_call.1} parent=27 // pred_fallthru
          _
        // Predicated region
        $region33: #{tpu_custom_call.1} parent=27 // pred_check
          %p286 = pneg %p113
        $region34: #{tpu_custom_call.1} parent=27 // pred_check_branch
          %288 = sbr.rel (%p286) target = $region36
        $region35: #{tpu_custom_call.1} parent=27 // pred_region
          %s289 = sand.u32 %s22, 1
          %s290 = scalar_lea.sflag [#allocation7], %s289
          %s291 = sand.u32 %s103, 1
          %s292 = smul.addr %s291, 8
          %s293 = scalar_lea.vmem [#allocation6], %s292
          %s294 = smul.u32 %s30, 2
          %s295 = ssub.s32 %s294, 1
          %p296 = scmp.gt.s32.totalorder %s295, 0
          %s297 = scalar_select %p296, %s295, 0
          %s298 = smul.u32 2, %s297
          %300 = vsyncadd %s290, 0
          %s301 = smul.addr %s29, 8
          %s302 = sadd.s32 %s298, %s301
          %s303 = smul.addr %s302, 4
          %s304 = scalar_lea.hbm %s2, %s303
          %s306 = sshll.u32 %s304, 4
          %s307 = int_to_ptr.hbm [resolvable:$true] %s306
          %s308 = sshll.u32 %s293, 4
          %s309 = int_to_ptr.vmem [resolvable:$true] %s308
          %311 = dma.hbm_to_vmem [thread:$0]  %s307, 128, %s309, %s290
        $region36: #{tpu_custom_call.1} parent=27 // pred_fallthru
          _
        // Predicated region
        $region37: #{tpu_custom_call.1} parent=27 // pred_check
          %p312 = pneg %p149
        $region38: #{tpu_custom_call.1} parent=27 // pred_check_branch
          %314 = sbr.rel (%p312) target = $region40
        $region39: #{tpu_custom_call.1} parent=27 // pred_region
          %s315 = sand.u32 %s22, 1
          %s316 = scalar_lea.sflag [#allocation7], %s315
          %s317 = sand.u32 %s139, 1
          %s318 = smul.addr %s317, 8
          %s319 = scalar_lea.vmem [#allocation8], %s318
          %s320 = sadd.s32 %s30, 1
          %s321 = smul.u32 %s320, 2
          %p322 = scmp.lt.s32.totalorder %s321, 3
          %s323 = scalar_select %p322, %s321, 3
          %s324 = smul.u32 2, %s323
          %326 = vsyncadd %s316, 0
          %s327 = smul.addr %s29, 8
          %s328 = sadd.s32 %s324, %s327
          %s329 = smul.addr %s328, 4
          %s330 = scalar_lea.hbm %s3, %s329
          %s332 = sshll.u32 %s330, 4
          %s333 = int_to_ptr.hbm [resolvable:$true] %s332
          %s334 = sshll.u32 %s319, 4
          %s335 = int_to_ptr.vmem [resolvable:$true] %s334
          %337 = dma.hbm_to_vmem [thread:$0]  %s333, 128, %s335, %s316
        $region40: #{tpu_custom_call.1} parent=27 // pred_fallthru
          _
      $region28: #{tpu_custom_call.1} parent=5 // pred_fallthru
        _
      %p338 = scmp.le.s32.totalorder 1, %s22
      %p339 = scmp.lt.s32.totalorder %s22, 5
      %p340 = pnand %p338, %p339
      %p341 = pneg %p340
      // Predicated region
      $region41: #{tpu_custom_call.1} parent=5 // pred_check
        _
      $region42: #{tpu_custom_call.1} parent=5 // pred_check_branch
        %343 = sbr.rel (%p340) target = $region44
      $region43: #{tpu_custom_call.1} parent=5 // pred_region
        %s344 = ssub.s32 %s22, 1
        %s345 = sand.u32 %s70, 1
        %s346 = scalar_lea.sflag [#allocation4], %s345
        %s347 = sand.u32 %s70, 1
        %s348 = smul.addr %s347, 16
        %s349 = scalar_lea.vmem [#allocation3], %s348
        // Predicated region
        $region45: #{tpu_custom_call.1} parent=43 // pred_check
          %p350 = pneg %p83
        $region46: #{tpu_custom_call.1} parent=43 // pred_check_branch
          %352 = sbr.rel (%p350) target = $region48
        $region47: #{tpu_custom_call.1} parent=43 // pred_region
          %354 = dma.done %s346, 256
        $region48: #{tpu_custom_call.1} parent=43 // pred_fallthru
          _
        %s355 = sand.u32 %s27, 1
        %s356 = scalar_lea.sflag [#allocation7], %s355
        %s357 = sand.u32 %s106, 1
        %s358 = smul.addr %s357, 8
        %s359 = scalar_lea.vmem [#allocation6], %s358
        // Predicated region
        $region49: #{tpu_custom_call.1} parent=43 // pred_check
          %p360 = pneg %p119
        $region50: #{tpu_custom_call.1} parent=43 // pred_check_branch
          %362 = sbr.rel (%p360) target = $region52
        $region51: #{tpu_custom_call.1} parent=43 // pred_region
          %364 = dma.done %s356, 128
        $region52: #{tpu_custom_call.1} parent=43 // pred_fallthru
          _
        %s365 = sand.u32 %s27, 1
        %s366 = scalar_lea.sflag [#allocation7], %s365
        %s367 = sand.u32 %s142, 1
        %s368 = smul.addr %s367, 8
        %s369 = scalar_lea.vmem [#allocation8], %s368
        // Predicated region
        $region53: #{tpu_custom_call.1} parent=43 // pred_check
          %p370 = pneg %p155
        $region54: #{tpu_custom_call.1} parent=43 // pred_check_branch
          %372 = sbr.rel (%p370) target = $region56
        $region55: #{tpu_custom_call.1} parent=43 // pred_region
          %374 = dma.done %s366, 128
        $region56: #{tpu_custom_call.1} parent=43 // pred_fallthru
          _
        // Predicated region
        $region57: #{tpu_custom_call.1} parent=43 // pred_check
          %p375 = pneg %p176
        $region58: #{tpu_custom_call.1} parent=43 // pred_check_branch
          %377 = sbr.rel (%p375) target = $region60
        $region59: #{tpu_custom_call.1} parent=43 // pred_region
          %379 = dma.done [#allocation10], 384
        $region60: #{tpu_custom_call.1} parent=43 // pred_fallthru
          _
        %p380 = pneg %p55
        %p381 = pneg %p52
        %s382 = sand.u32 %s70, 1
        %s383 = scalar_lea.sflag [#allocation4], %s382
        %s384 = sand.u32 %s70, 1
        %s385 = smul.addr %s384, 16
        %s386 = scalar_lea.vmem [#allocation3], %s385
        %p387 = pneg %p83
        %p388 = pneg %p80
        %s389 = sand.u32 %s27, 1
        %s390 = scalar_lea.sflag [#allocation7], %s389
        %s391 = sand.u32 %s106, 1
        %s392 = smul.addr %s391, 8
        %s393 = scalar_lea.vmem [#allocation6], %s392
        %p394 = pneg %p119
        %p395 = pneg %p116
        %s396 = sand.u32 %s27, 1
        %s397 = scalar_lea.sflag [#allocation7], %s396
        %s398 = sand.u32 %s142, 1
        %s399 = smul.addr %s398, 8
        %s400 = scalar_lea.vmem [#allocation8], %s399
        %p401 = pneg %p155
        %p402 = pneg %p152
        %p403 = pneg %p176
        %p404 = pneg %p173
        %p405 = pneg %p197
        %p406 = pneg %p194
        %p407 = pneg %p225
        %p408 = pneg %p222
        %s409 = sand.u32 %s212, 1
        %s410 = scalar_lea.sflag [#allocation5], %s409
        %s411 = sand.u32 %s212, 1
        %s412 = smul.addr %s411, 32
        %s413 = scalar_lea.vmem [#allocation11], %s412
        %s414 = smul.u32 4, %s32
        %s415 = smul.u32 %s32, 2
        %s416 = ssub.s32 %s415, 1
        %p417 = scmp.gt.s32.totalorder %s416, 0
        %s418 = scalar_select %p417, %s416, 0
        %s419 = smul.u32 2, %s418
        %s420 = sadd.s32 %s32, 1
        %s421 = smul.u32 %s420, 2
        %p422 = scmp.lt.s32.totalorder %s421, 3
        %s423 = scalar_select %p422, %s421, 3
        %s424 = smul.u32 2, %s423
        %s425 = smul.u32 4, %s32
        %v426 = vld [vmem:[%s349] sm:$0xff]
        %v427 = vld [vmem:[%s349 + $0x8] sm:$0xff]
        %v428 = vld [vmem:[%s359] sm:$0xff]
        %v429 = vld [vmem:[%s369] sm:$0xff]
        %p430 = scmp.gt.s32.totalorder %s32, 0
        %s431 = scalar_select %p430, 1, 0
        %v432 = vstv %s431
        %vm433 = vcmp.eq.s32.totalorder %v432, 1
        %435 = vrot.lane.b32.xlu0 %v428, 32
        %v436 = vpop.permute.xlu0 %435
        %v437 = vrot.slane %v436, 4
        %v439 = vsel %vm433, %v437, %v428
        %p440 = scmp.lt.s32.totalorder %s32, 1
        %s441 = scalar_select %p440, 1, 0
        %v442 = vstv %s441
        %vm443 = vcmp.eq.s32.totalorder %v442, 1
        %445 = vrot.lane.b32.xlu0 %v429, 32
        %v446 = vpop.permute.xlu0 %445
        %v447 = vrot.slane %v446, 4
        %v449 = vsel %vm443, %v429, %v447
        %s451 = scalar_lea.vmem [#allocation1], 1
        %452 = vst [vmem:[%s451] ss:$2 sm:$0xff] %v439
        %v453 = vld.sshfl [vmem:[#allocation1] sm:$0xff pattern:$0x75316420]
        %vm455 = vcmask 261124
        %456 = vst.msk [vmem:[#allocation2] sm:$0xf0] %vm455, %v453
        %s459 = scalar_lea.vmem [#allocation1], 1
        %460 = vst [vmem:[%s459] ss:$2 sm:$0xff] %v426
        %s461 = scalar_lea.vmem [#allocation1], 17
        %462 = vst [vmem:[%s461] ss:$2 sm:$0xff] %v427
        %v463 = vld.sshfl [vmem:[#allocation1] sm:$0xff pattern:$0x75316420]
        %v464 = vld.sshfl [vmem:[#allocation1 + $0x8] sm:$0xff pattern:$0x75316420]
        %v465 = vld.sshfl [vmem:[#allocation1 + $0x10] sm:$0xff pattern:$0x75316420]
        %v466 = vld.sshfl [vmem:[#allocation1 + $0x18] sm:$0xff pattern:$0x75316420]
        %467 = vrot.lane.b32.xlu0 %v463, 32
        %v468 = vpop.permute.xlu0 %467
        %469 = vrot.lane.b32.xlu0 %v464, 32
        %v470 = vpop.permute.xlu0 %469
        %471 = vrot.lane.b32.xlu0 %v465, 32
        %v472 = vpop.permute.xlu0 %471
        %473 = vrot.lane.b32.xlu0 %v466, 32
        %v474 = vpop.permute.xlu0 %473
        %vm475 = vcmask 261120
        %v476 = vsel %vm475, %v468, %v470
        %v477 = vsel %vm475, %v470, %v472
        %v478 = vsel %vm475, %v472, %v474
        %vm484 = vcmask 1047812
        %485 = vst.msk [vmem:[#allocation2] sm:$0xf0] %vm484, %v468
        %486 = vst [vmem:[#allocation2 + $0x8] sm:$0xf0] %v476
        %487 = vst [vmem:[#allocation2 + $0x10] sm:$0xf0] %v477
        %488 = vst [vmem:[#allocation2 + $0x18] sm:$0xf0] %v478
        %489 = vst.msk [vmem:[#allocation2 + $0x20] sm:$0xf0] %vm455, %v474
        %s491 = scalar_lea.vmem [#allocation1], 1
        %492 = vst [vmem:[%s491] ss:$2 sm:$0xff] %v449
        %v493 = vld.sshfl [vmem:[#allocation1] sm:$0xff pattern:$0x75316420]
        %494 = vrot.lane.b32.xlu0 %v493, 32
        %v495 = vpop.permute.xlu0 %494
        %vm497 = vcmask 523524
        %498 = vst.msk [vmem:[#allocation2 + $0x20] sm:$0xf0] %vm497, %v495
        %v499 = vld [vmem:[#allocation2] sm:$0xf0]
        %v500 = vld [vmem:[#allocation2 + $0x8] sm:$0xf0]
        %v501 = vld [vmem:[#allocation2 + $0x10] sm:$0xf0]
        %v502 = vld [vmem:[#allocation2 + $0x18] sm:$0xf0]
        %v503 = vld [vmem:[#allocation2 + $0x20] sm:$0xf0]
        %v504 = vld [vmem:[%s0] sm:$0x1f]
        %vm505 = vcmp.eq.s32.totalorder %v504, 0
        %vm506 = vcmp.eq.s32.totalorder %v504, 31
        %508 = vrot.lane.b32.xlu0 %v503, 65
        %v509 = vpop.permute.xlu0 %508
        %515 = vrot.lane.b32.xlu0 %v499, 1
        %v516 = vpop.permute.xlu0 %515
        %517 = vrot.lane.b32.xlu0 %v500, 1
        %v518 = vpop.permute.xlu0 %517
        %519 = vrot.lane.b32.xlu0 %v501, 1
        %v520 = vpop.permute.xlu0 %519
        %521 = vrot.lane.b32.xlu0 %v502, 1
        %v522 = vpop.permute.xlu0 %521
        %523 = vrot.lane.b32.xlu0 %v503, 1
        %v524 = vpop.permute.xlu0 %523
        %vm525 = vcmask 7168
        %v526 = vsel %vm525, %v516, %v518
        %v527 = vsel %vm525, %v518, %v520
        %v528 = vsel %vm525, %v520, %v522
        %v529 = vsel %vm525, %v522, %v524
        %v535 = vsel %vm525, %v509, %v516
        %v536 = vsel %vm505, 1, 0
        %v537 = vperm.slane %v536, 0
        %v538 = vperm.slane %v536, 1
        %v539 = vperm.slane %v536, 2
        %v540 = vperm.slane %v536, 3
        %v541 = vperm.slane %v536, 4
        %vm542 = vcmp.eq.s32.totalorder %v537, 1
        %vm543 = vcmp.eq.s32.totalorder %v538, 1
        %vm544 = vcmp.eq.s32.totalorder %v539, 1
        %vm545 = vcmp.eq.s32.totalorder %v540, 1
        %vm546 = vcmp.eq.s32.totalorder %v541, 1
        %v547 = vsel %vm542, %v499, %v535
        %v548 = vsel %vm543, %v500, %v526
        %v549 = vsel %vm544, %v501, %v527
        %v550 = vsel %vm545, %v502, %v528
        %v551 = vsel %vm546, %v503, %v529
        %v557 = vrot.slane %v547, 4
        %v558 = vrot.slane %v548, 4
        %v559 = vrot.slane %v549, 4
        %v560 = vrot.slane %v550, 4
        %v561 = vrot.slane %v551, 4
        %567 = vst [vmem:[#allocation2] sm:$0xf] %v557
        %568 = vst [vmem:[#allocation2 + $0x8] sm:$0xf] %v558
        %569 = vst [vmem:[#allocation2 + $0x10] sm:$0xf] %v559
        %570 = vst [vmem:[#allocation2 + $0x18] sm:$0xf] %v560
        %vm571 = vcmask 519168
        %572 = vst.msk [vmem:[#allocation2 + $0x20] sm:$0xf] %vm571, %v561
        %573 = vrot.lane.b32.xlu0 %v499, 127
        %v574 = vpop.permute.xlu0 %573
        %575 = vrot.lane.b32.xlu0 %v500, 127
        %v576 = vpop.permute.xlu0 %575
        %577 = vrot.lane.b32.xlu0 %v501, 127
        %v578 = vpop.permute.xlu0 %577
        %579 = vrot.lane.b32.xlu0 %v502, 127
        %v580 = vpop.permute.xlu0 %579
        %581 = vrot.lane.b32.xlu0 %v503, 127
        %v582 = vpop.permute.xlu0 %581
        %vm583 = vcmask 1039360
        %v584 = vsel %vm583, %v574, %v576
        %v585 = vsel %vm583, %v576, %v578
        %v586 = vsel %vm583, %v578, %v580
        %v587 = vsel %vm583, %v580, %v582
        %593 = vrot.lane.b32.xlu0 %v499, 63
        %v594 = vpop.permute.xlu0 %593
        %vm596 = vcmask 515072
        %v597 = vsel %vm596, %v582, %v594
        %v598 = vsel %vm506, 1, 0
        %v599 = vperm.slane %v598, 0
        %v600 = vperm.slane %v598, 1
        %v601 = vperm.slane %v598, 2
        %v602 = vperm.slane %v598, 3
        %v603 = vperm.slane %v598, 4
        %vm604 = vcmp.eq.s32.totalorder %v599, 1
        %vm605 = vcmp.eq.s32.totalorder %v600, 1
        %vm606 = vcmp.eq.s32.totalorder %v601, 1
        %vm607 = vcmp.eq.s32.totalorder %v602, 1
        %vm608 = vcmp.eq.s32.totalorder %v603, 1
        %v609 = vsel %vm604, %v499, %v584
        %v610 = vsel %vm605, %v500, %v585
        %v611 = vsel %vm606, %v501, %v586
        %v612 = vsel %vm607, %v502, %v587
        %v613 = vsel %vm608, %v503, %v597
        %v619 = vrot.slane %v609, 4
        %v620 = vrot.slane %v610, 4
        %v621 = vrot.slane %v611, 4
        %v622 = vrot.slane %v612, 4
        %v623 = vrot.slane %v613, 4
        %629 = vst [vmem:[#allocation2 + $0x28] sm:$0xf] %v619
        %630 = vst [vmem:[#allocation2 + $0x30] sm:$0xf] %v620
        %631 = vst [vmem:[#allocation2 + $0x38] sm:$0xf] %v621
        %632 = vst [vmem:[#allocation2 + $0x40] sm:$0xf] %v622
        %633 = vst.msk [vmem:[#allocation2 + $0x48] sm:$0xf] %vm571, %v623
        %v634 = vld [vmem:[#allocation2] sm:$0xff]
        %v635 = vld [vmem:[#allocation2 + $0x8] sm:$0xff]
        %v636 = vld [vmem:[#allocation2 + $0x10] sm:$0xff]
        %v637 = vld [vmem:[#allocation2 + $0x18] sm:$0xff]
        %v638 = vld [vmem:[#allocation2 + $0x28] sm:$0xf]
        %v639 = vld [vmem:[#allocation2 + $0x30] sm:$0xf]
        %v640 = vld [vmem:[#allocation2 + $0x38] sm:$0xf]
        %v641 = vld [vmem:[#allocation2 + $0x40] sm:$0xf]
        %v642 = vld [vmem:[#allocation9] sm:$0xff]
        %v643 = vld [vmem:[#allocation2 + $0x20] sm:$0xff]
        %v644 = vld [vmem:[#allocation2 + $0x48] sm:$0xf]
        %s645 = scalar_lea.vmem [#allocation9], 8
        %v646 = vld [vmem:[%s645] sm:$0xff]
        %657 = vrot.lane.b32.xlu0 %v634, 96
        %v658 = vpop.permute.xlu0 %657
        %659 = vrot.lane.b32.xlu0 %v635, 96
        %v660 = vpop.permute.xlu0 %659
        %661 = vrot.lane.b32.xlu0 %v636, 96
        %v662 = vpop.permute.xlu0 %661
        %663 = vrot.lane.b32.xlu0 %v637, 96
        %v664 = vpop.permute.xlu0 %663
        %665 = vrot.lane.b32.xlu0 %v643, 96
        %v666 = vpop.permute.xlu0 %665
        %667 = vrot.lane.b32.xlu0 %v638, 96
        %v668 = vpop.permute.xlu0 %667
        %669 = vrot.lane.b32.xlu0 %v639, 96
        %v670 = vpop.permute.xlu0 %669
        %671 = vrot.lane.b32.xlu0 %v640, 96
        %v672 = vpop.permute.xlu0 %671
        %673 = vrot.lane.b32.xlu0 %v641, 96
        %v674 = vpop.permute.xlu0 %673
        %675 = vrot.lane.b32.xlu0 %v644, 96
        %v676 = vpop.permute.xlu0 %675
        %vm677 = vcmask 785408
        %v678 = vsel %vm677, %v658, %v660
        %v679 = vsel %vm677, %v660, %v662
        %v680 = vsel %vm677, %v662, %v664
        %v681 = vsel %vm677, %v664, %v666
        %v682 = vsel %vm677, %v668, %v670
        %v683 = vsel %vm677, %v670, %v672
        %v684 = vsel %vm677, %v672, %v674
        %v685 = vsel %vm677, %v674, %v676
        %vm690 = vcmask 97280
        %v692 = vsel %vm690, %v646, 0
        %vm694 = vcmask 1043456
        %v695 = vsel %vm694, %v682, 0
        %v697 = vsel %vm694, %v683, 0
        %v699 = vsel %vm694, %v684, 0
        %v701 = vsel %vm694, %v685, 0
        %703 = vmatpush.msra.mxu0 0.0
        %704 = vmatpush.msra.mxu0 0.0
        %705 = vmatpush.msra.mxu0 0.0
        %706 = vmatpush.msra.mxu0 0.0
        %707 = vmatpush.msra.mxu0 0.0
        %708 = vmatpush.msra.mxu0 0.0
        %709 = vmatpush.msra.mxu0 0.0
        %710 = vmatpush.msra.mxu0 0.0
        %711 = vmatpush.msra.mxu0 0.0
        %712 = vmatpush.msra.mxu0 0.0
        %713 = vmatpush.msra.mxu0 0.0
        %714 = vmatpush.msra.mxu0 0.0
        %715 = vmatpush.msra.mxu0 0.0
        %716 = vmatpush.msra.mxu0 0.0
        %717 = vmatpush.msra.mxu0 %v695
        %718 = vmatpush.msra.mxu0 %v678
        %719 = vmatmul.f32.gmra.mxu0 %v692
        %v720 = vpop.f32.mrf.mxu0
        %v721 = vadd.f32 0.0, %v720
        %722 = vdwg.mxu0
        %723 = vmatpush.msra.mxu0 0.0
        %724 = vmatpush.msra.mxu0 0.0
        %725 = vmatpush.msra.mxu0 0.0
        %726 = vmatpush.msra.mxu0 0.0
        %727 = vmatpush.msra.mxu0 0.0
        %728 = vmatpush.msra.mxu0 0.0
        %729 = vmatpush.msra.mxu0 0.0
        %730 = vmatpush.msra.mxu0 0.0
        %731 = vmatpush.msra.mxu0 0.0
        %732 = vmatpush.msra.mxu0 0.0
        %733 = vmatpush.msra.mxu0 0.0
        %734 = vmatpush.msra.mxu0 0.0
        %735 = vmatpush.msra.mxu0 0.0
        %736 = vmatpush.msra.mxu0 0.0
        %737 = vmatpush.msra.mxu0 %v697
        %738 = vmatpush.msra.mxu0 %v679
        %739 = vmatmul.f32.gmra.mxu0 %v692
        %v740 = vpop.f32.mrf.mxu0
        %v741 = vadd.f32 0.0, %v740
        %742 = vdwg.mxu0
        %743 = vmatpush.msra.mxu0 0.0
        %744 = vmatpush.msra.mxu0 0.0
        %745 = vmatpush.msra.mxu0 0.0
        %746 = vmatpush.msra.mxu0 0.0
        %747 = vmatpush.msra.mxu0 0.0
        %748 = vmatpush.msra.mxu0 0.0
        %749 = vmatpush.msra.mxu0 0.0
        %750 = vmatpush.msra.mxu0 0.0
        %751 = vmatpush.msra.mxu0 0.0
        %752 = vmatpush.msra.mxu0 0.0
        %753 = vmatpush.msra.mxu0 0.0
        %754 = vmatpush.msra.mxu0 0.0
        %755 = vmatpush.msra.mxu0 0.0
        %756 = vmatpush.msra.mxu0 0.0
        %757 = vmatpush.msra.mxu0 %v699
        %758 = vmatpush.msra.mxu0 %v680
        %759 = vmatmul.f32.gmra.mxu0 %v692
        %v760 = vpop.f32.mrf.mxu0
        %v761 = vadd.f32 0.0, %v760
        %762 = vdwg.mxu0
        %763 = vmatpush.msra.mxu0 0.0
        %764 = vmatpush.msra.mxu0 0.0
        %765 = vmatpush.msra.mxu0 0.0
        %766 = vmatpush.msra.mxu0 0.0
        %767 = vmatpush.msra.mxu0 0.0
        %768 = vmatpush.msra.mxu0 0.0
        %769 = vmatpush.msra.mxu0 0.0
        %770 = vmatpush.msra.mxu0 0.0
        %771 = vmatpush.msra.mxu0 0.0
        %772 = vmatpush.msra.mxu0 0.0
        %773 = vmatpush.msra.mxu0 0.0
        %774 = vmatpush.msra.mxu0 0.0
        %775 = vmatpush.msra.mxu0 0.0
        %776 = vmatpush.msra.mxu0 0.0
        %777 = vmatpush.msra.mxu0 %v701
        %778 = vmatpush.msra.mxu0 %v681
        %779 = vmatmul.f32.gmra.mxu0 %v692
        %v780 = vpop.f32.mrf.mxu0
        %v781 = vadd.f32 0.0, %v780
        %782 = vdwg.mxu0
        %v784 = vsel %vm690, %v642, 0
        %v786 = vsel %vm694, %v638, 0
        %v788 = vsel %vm694, %v639, 0
        %v790 = vsel %vm694, %v640, 0
        %v792 = vsel %vm694, %v641, 0
        %794 = vmatpush.msra.mxu0 0.0
        %795 = vmatpush.msra.mxu0 0.0
        %796 = vmatpush.msra.mxu0 0.0
        %797 = vmatpush.msra.mxu0 0.0
        %798 = vmatpush.msra.mxu0 0.0
        %799 = vmatpush.msra.mxu0 0.0
        %800 = vmatpush.msra.mxu0 0.0
        %801 = vmatpush.msra.mxu0 0.0
        %802 = vmatpush.msra.mxu0 0.0
        %803 = vmatpush.msra.mxu0 0.0
        %804 = vmatpush.msra.mxu0 0.0
        %805 = vmatpush.msra.mxu0 0.0
        %806 = vmatpush.msra.mxu0 0.0
        %807 = vmatpush.msra.mxu0 0.0
        %808 = vmatpush.msra.mxu0 %v786
        %809 = vmatpush.msra.mxu0 %v634
        %810 = vmatmul.f32.gmra.mxu0 %v784
        %v811 = vpop.f32.mrf.mxu0
        %v812 = vadd.f32 %v721, %v811
        %813 = vdwg.mxu0
        %814 = vmatpush.msra.mxu0 0.0
        %815 = vmatpush.msra.mxu0 0.0
        %816 = vmatpush.msra.mxu0 0.0
        %817 = vmatpush.msra.mxu0 0.0
        %818 = vmatpush.msra.mxu0 0.0
        %819 = vmatpush.msra.mxu0 0.0
        %820 = vmatpush.msra.mxu0 0.0
        %821 = vmatpush.msra.mxu0 0.0
        %822 = vmatpush.msra.mxu0 0.0
        %823 = vmatpush.msra.mxu0 0.0
        %824 = vmatpush.msra.mxu0 0.0
        %825 = vmatpush.msra.mxu0 0.0
        %826 = vmatpush.msra.mxu0 0.0
        %827 = vmatpush.msra.mxu0 0.0
        %828 = vmatpush.msra.mxu0 %v788
        %829 = vmatpush.msra.mxu0 %v635
        %830 = vmatmul.f32.gmra.mxu0 %v784
        %v831 = vpop.f32.mrf.mxu0
        %v832 = vadd.f32 %v741, %v831
        %833 = vdwg.mxu0
        %834 = vmatpush.msra.mxu0 0.0
        %835 = vmatpush.msra.mxu0 0.0
        %836 = vmatpush.msra.mxu0 0.0
        %837 = vmatpush.msra.mxu0 0.0
        %838 = vmatpush.msra.mxu0 0.0
        %839 = vmatpush.msra.mxu0 0.0
        %840 = vmatpush.msra.mxu0 0.0
        %841 = vmatpush.msra.mxu0 0.0
        %842 = vmatpush.msra.mxu0 0.0
        %843 = vmatpush.msra.mxu0 0.0
        %844 = vmatpush.msra.mxu0 0.0
        %845 = vmatpush.msra.mxu0 0.0
        %846 = vmatpush.msra.mxu0 0.0
        %847 = vmatpush.msra.mxu0 0.0
        %848 = vmatpush.msra.mxu0 %v790
        %849 = vmatpush.msra.mxu0 %v636
        %850 = vmatmul.f32.gmra.mxu0 %v784
        %v851 = vpop.f32.mrf.mxu0
        %v852 = vadd.f32 %v761, %v851
        %853 = vdwg.mxu0
        %854 = vmatpush.msra.mxu0 0.0
        %855 = vmatpush.msra.mxu0 0.0
        %856 = vmatpush.msra.mxu0 0.0
        %857 = vmatpush.msra.mxu0 0.0
        %858 = vmatpush.msra.mxu0 0.0
        %859 = vmatpush.msra.mxu0 0.0
        %860 = vmatpush.msra.mxu0 0.0
        %861 = vmatpush.msra.mxu0 0.0
        %862 = vmatpush.msra.mxu0 0.0
        %863 = vmatpush.msra.mxu0 0.0
        %864 = vmatpush.msra.mxu0 0.0
        %865 = vmatpush.msra.mxu0 0.0
        %866 = vmatpush.msra.mxu0 0.0
        %867 = vmatpush.msra.mxu0 0.0
        %868 = vmatpush.msra.mxu0 %v792
        %869 = vmatpush.msra.mxu0 %v637
        %870 = vmatmul.f32.gmra.mxu0 %v784
        %v871 = vpop.f32.mrf.mxu0
        %v872 = vadd.f32 %v781, %v871
        %873 = vdwg.mxu0
        %s874 = scalar_lea.vmem [#allocation9], 16
        %v875 = vld [vmem:[%s874] sm:$0xff]
        %876 = vrot.lane.b32.xlu0 %v634, 64
        %v877 = vpop.permute.xlu0 %876
        %878 = vrot.lane.b32.xlu0 %v635, 64
        %v879 = vpop.permute.xlu0 %878
        %880 = vrot.lane.b32.xlu0 %v636, 64
        %v881 = vpop.permute.xlu0 %880
        %882 = vrot.lane.b32.xlu0 %v637, 64
        %v883 = vpop.permute.xlu0 %882
        %884 = vrot.lane.b32.xlu0 %v643, 64
        %v885 = vpop.permute.xlu0 %884
        %886 = vrot.lane.b32.xlu0 %v638, 64
        %v887 = vpop.permute.xlu0 %886
        %888 = vrot.lane.b32.xlu0 %v639, 64
        %v889 = vpop.permute.xlu0 %888
        %890 = vrot.lane.b32.xlu0 %v640, 64
        %v891 = vpop.permute.xlu0 %890
        %892 = vrot.lane.b32.xlu0 %v641, 64
        %v893 = vpop.permute.xlu0 %892
        %894 = vrot.lane.b32.xlu0 %v644, 64
        %v895 = vpop.permute.xlu0 %894
        %vm896 = vcmask 523264
        %v897 = vsel %vm896, %v877, %v879
        %v898 = vsel %vm896, %v879, %v881
        %v899 = vsel %vm896, %v881, %v883
        %v900 = vsel %vm896, %v883, %v885
        %v901 = vsel %vm896, %v887, %v889
        %v902 = vsel %vm896, %v889, %v891
        %v903 = vsel %vm896, %v891, %v893
        %v904 = vsel %vm896, %v893, %v895
        %v910 = vsel %vm690, %v875, 0
        %v912 = vsel %vm694, %v901, 0
        %v914 = vsel %vm694, %v902, 0
        %v916 = vsel %vm694, %v903, 0
        %v918 = vsel %vm694, %v904, 0
        %920 = vmatpush.msra.mxu0 0.0
        %921 = vmatpush.msra.mxu0 0.0
        %922 = vmatpush.msra.mxu0 0.0
        %923 = vmatpush.msra.mxu0 0.0
        %924 = vmatpush.msra.mxu0 0.0
        %925 = vmatpush.msra.mxu0 0.0
        %926 = vmatpush.msra.mxu0 0.0
        %927 = vmatpush.msra.mxu0 0.0
        %928 = vmatpush.msra.mxu0 0.0
        %929 = vmatpush.msra.mxu0 0.0
        %930 = vmatpush.msra.mxu0 0.0
        %931 = vmatpush.msra.mxu0 0.0
        %932 = vmatpush.msra.mxu0 0.0
        %933 = vmatpush.msra.mxu0 0.0
        %934 = vmatpush.msra.mxu0 %v912
        %935 = vmatpush.msra.mxu0 %v897
        %936 = vmatmul.f32.gmra.mxu0 %v910
        %v937 = vpop.f32.mrf.mxu0
        %v938 = vadd.f32 0.0, %v937
        %939 = vdwg.mxu0
        %940 = vmatpush.msra.mxu0 0.0
        %941 = vmatpush.msra.mxu0 0.0
        %942 = vmatpush.msra.mxu0 0.0
        %943 = vmatpush.msra.mxu0 0.0
        %944 = vmatpush.msra.mxu0 0.0
        %945 = vmatpush.msra.mxu0 0.0
        %946 = vmatpush.msra.mxu0 0.0
        %947 = vmatpush.msra.mxu0 0.0
        %948 = vmatpush.msra.mxu0 0.0
        %949 = vmatpush.msra.mxu0 0.0
        %950 = vmatpush.msra.mxu0 0.0
        %951 = vmatpush.msra.mxu0 0.0
        %952 = vmatpush.msra.mxu0 0.0
        %953 = vmatpush.msra.mxu0 0.0
        %954 = vmatpush.msra.mxu0 %v914
        %955 = vmatpush.msra.mxu0 %v898
        %956 = vmatmul.f32.gmra.mxu0 %v910
        %v957 = vpop.f32.mrf.mxu0
        %v958 = vadd.f32 0.0, %v957
        %959 = vdwg.mxu0
        %960 = vmatpush.msra.mxu0 0.0
        %961 = vmatpush.msra.mxu0 0.0
        %962 = vmatpush.msra.mxu0 0.0
        %963 = vmatpush.msra.mxu0 0.0
        %964 = vmatpush.msra.mxu0 0.0
        %965 = vmatpush.msra.mxu0 0.0
        %966 = vmatpush.msra.mxu0 0.0
        %967 = vmatpush.msra.mxu0 0.0
        %968 = vmatpush.msra.mxu0 0.0
        %969 = vmatpush.msra.mxu0 0.0
        %970 = vmatpush.msra.mxu0 0.0
        %971 = vmatpush.msra.mxu0 0.0
        %972 = vmatpush.msra.mxu0 0.0
        %973 = vmatpush.msra.mxu0 0.0
        %974 = vmatpush.msra.mxu0 %v916
        %975 = vmatpush.msra.mxu0 %v899
        %976 = vmatmul.f32.gmra.mxu0 %v910
        %v977 = vpop.f32.mrf.mxu0
        %v978 = vadd.f32 0.0, %v977
        %979 = vdwg.mxu0
        %980 = vmatpush.msra.mxu0 0.0
        %981 = vmatpush.msra.mxu0 0.0
        %982 = vmatpush.msra.mxu0 0.0
        %983 = vmatpush.msra.mxu0 0.0
        %984 = vmatpush.msra.mxu0 0.0
        %985 = vmatpush.msra.mxu0 0.0
        %986 = vmatpush.msra.mxu0 0.0
        %987 = vmatpush.msra.mxu0 0.0
        %988 = vmatpush.msra.mxu0 0.0
        %989 = vmatpush.msra.mxu0 0.0
        %990 = vmatpush.msra.mxu0 0.0
        %991 = vmatpush.msra.mxu0 0.0
        %992 = vmatpush.msra.mxu0 0.0
        %993 = vmatpush.msra.mxu0 0.0
        %994 = vmatpush.msra.mxu0 %v918
        %995 = vmatpush.msra.mxu0 %v900
        %996 = vmatmul.f32.gmra.mxu0 %v910
        %v997 = vpop.f32.mrf.mxu0
        %v998 = vadd.f32 0.0, %v997
        %999 = vdwg.mxu0
        %v1000 = vadd.f32 %v812, %v938
        %v1001 = vadd.f32 %v832, %v958
        %v1002 = vadd.f32 %v852, %v978
        %v1003 = vadd.f32 %v872, %v998
        %v1004 = vld [vmem:[%s5] sm:$0xff]
        %1006 = vset.pattern.permute.xlu0 0
        %1007 = vperm.xlu0 %1006, %v1004
        %v1008 = vpop.permute.xlu0 %1007
        %v1010 = vadd.f32 %v1000, %v1008
        %v1011 = vadd.f32 %v1001, %v1008
        %v1012 = vadd.f32 %v1002, %v1008
        %v1013 = vadd.f32 %v1003, %v1008
        %v1014 = vmax.f32 %v1010, 0.0
        %v1015 = vmax.f32 %v1011, 0.0
        %v1016 = vmax.f32 %v1012, 0.0
        %v1017 = vmax.f32 %v1013, 0.0
        %1018 = vst [vmem:[%s413] sm:$0xff] %v1014
        %1019 = vst [vmem:[%s413 + $0x8] sm:$0xff] %v1015
        %1020 = vst [vmem:[%s413 + $0x10] sm:$0xff] %v1016
        %1021 = vst [vmem:[%s413 + $0x18] sm:$0xff] %v1017
        %s1022 = sand.u32 %s212, 1
        %s1023 = scalar_lea.sflag [#allocation5], %s1022
        %s1024 = sand.u32 %s212, 1
        %s1025 = smul.addr %s1024, 32
        %s1026 = scalar_lea.vmem [#allocation11], %s1025
        // Predicated region
        $region61: #{tpu_custom_call.1} parent=43 // pred_check
          %p1027 = pneg %p222
        $region62: #{tpu_custom_call.1} parent=43 // pred_check_branch
          %1029 = sbr.rel (%p1027) target = $region64
        $region63: #{tpu_custom_call.1} parent=43 // pred_region
          %s1030 = smul.u32 4, %s32
          %1032 = vsyncadd %s1023, 0
          %s1033 = smul.addr %s31, 8
          %s1034 = sadd.s32 %s1030, %s1033
          %s1035 = smul.addr %s1034, 8
          %s1036 = scalar_lea.hbm %s6, %s1035
          %s1038 = sshll.u32 %s1026, 4
          %s1039 = int_to_ptr.vmem [resolvable:$true] %s1038
          %s1040 = sshll.u32 %s1036, 4
          %s1041 = int_to_ptr.hbm [resolvable:$true] %s1040
          %1043 = dma.vmem_to_hbm [thread:$0]  %s1039, 512, %s1041, %s1023
        $region64: #{tpu_custom_call.1} parent=43 // pred_fallthru
          _
      $region44: #{tpu_custom_call.1} parent=5 // pred_fallthru
        _
      %p1044 = scmp.le.s32.totalorder 2, %s22
      // Predicated region
      $region65: #{tpu_custom_call.1} parent=5 // pred_check
        %p1045 = pneg %p1044
      $region66: #{tpu_custom_call.1} parent=5 // pred_check_branch
        %1047 = sbr.rel (%p1045) target = $region68
      $region67: #{tpu_custom_call.1} parent=5 // pred_region
        %s1048 = ssub.s32 %s22, 2
        // Predicated region
        $region69: #{tpu_custom_call.1} parent=67 // pred_check
          %p1049 = pneg %p228
        $region70: #{tpu_custom_call.1} parent=67 // pred_check_branch
          %1051 = sbr.rel (%p1049) target = $region72
        $region71: #{tpu_custom_call.1} parent=67 // pred_region
          %s1052 = sand.u32 %s213, 1
          %s1053 = scalar_lea.sflag [#allocation5], %s1052
          %s1054 = sand.u32 %s213, 1
          %s1055 = smul.addr %s1054, 32
          %s1056 = scalar_lea.vmem [#allocation11], %s1055
          %1058 = dma.done %s1053, 512
        $region72: #{tpu_custom_call.1} parent=67 // pred_fallthru
          _
      $region68: #{tpu_custom_call.1} parent=5 // pred_fallthru
        _
    $region6: #{tpu_custom_call.1} parent=1 // loop_footer
      %s26 = sadd.s32 1, %s22
    $region7: #{tpu_custom_call.1} parent=1 // loop_footer_branch
      %21 = sbr.rel target = $region3
    $region8: #{tpu_custom_call.1} parent=1 // loop_exit
      _
    %1059 = vsyncpa [#allocation4], 1
    %s1060 = scalar_lea.sflag [#allocation4], 1
    %1061 = vsyncpa %s1060, 1
    %1062 = vsyncpa [#allocation7], 1
    %s1063 = scalar_lea.sflag [#allocation7], 1
    %1064 = vsyncpa %s1063, 1
    %1065 = vsyncpa [#allocation10], 1
    %1066 = vsyncpa [#allocation5], 1
    %s1067 = scalar_lea.sflag [#allocation5], 1
    %1068 = vsyncpa %s1067, 1

</llo_original>
